<compile_context>
chip_gen: v5e
topology: v5e:2x2
jax: 0.10.0
libtpu: 0.0.40
codegen_flags: <defaults>
</compile_context>

<pallas_src>
import jax
import jax.numpy as jnp
from jax import lax
from jax.experimental import pallas as pl
from jax.experimental.pallas import tpu as pltpu

_MIB = 1024 * 1024


def _round_up(x, m):
    return ((x + m - 1) // m) * m


def _pad8(c):
    return _round_up(max(int(c), 1), 8)


def _vmem_capacity_bytes():
    """Physical per-core VMEM; falls back to the smallest generation (v7x: 64
    MiB) so every tiling decision below is safe on any chip."""
    try:
        cap = getattr(pltpu.get_tpu_info(), "vmem_capacity_bytes", None)
        if cap:
            return int(cap)
    except Exception:
        pass
    return 64 * _MIB


def _pick_spatial_tile(hwp, lane_bytes, vmem_budget, cap=32768):
    """Largest TM dividing hwp that is a multiple of 128, <= cap lanes, and
    whose double-buffered blocks stay within half the VMEM budget."""
    assert hwp % 128 == 0
    for t in range(1, hwp // 128 + 1):
        if hwp % t == 0:
            tm = hwp // t
            if tm % 128 == 0 and tm <= cap and tm * lane_bytes <= vmem_budget // 2:
                return tm
    return 128


def _pick_batch_block(n, hwp, tm, lane_bytes, vmem_budget,
                      lane_target=32768, max_nb=8):
    """Batches per grid step.  >1 only when one batch's spatial extent fits in
    a single tile (tm == hwp) and is small, so each step still moves MiBs."""
    if tm != hwp:
        return 1
    nb = 1
    for cand in range(1, min(n, max_nb) + 1):
        if (n % cand == 0 and cand * hwp <= lane_target
                and cand * hwp * lane_bytes <= vmem_budget // 2):
            nb = cand
    return nb


def _make_kernel(inv_m, nb, t_blocks, cout, y_resident, eps=1e-5):
    def conv_tile(w1_ref, w2_ref, x1_ref, x2_ref, b):
        # (Cout, C1)@(C1, TM) + (Cout, C2)@(C2, TM) -> (Cout, TM), f32 accum.
        return (jnp.dot(w1_ref[...], x1_ref[b], preferred_element_type=jnp.float32)
                + jnp.dot(w2_ref[...], x2_ref[b], preferred_element_type=jnp.float32))

    def fold_stats(sum_ref, sq_ref, g_ref, b_ref):
        # NOTE: var = E[y^2] - E[y]^2 in f32; adequate at 1e-4 tolerances.
        # Switch to a shifted/Welford accumulator if tolerances ever tighten.
        mean = sum_ref[...] * inv_m
        var = sq_ref[...] * inv_m - mean * mean
        scale = g_ref[...] * lax.rsqrt(var + eps)          # rsqrt -> EUP slot
        shift = b_ref[...] - mean * scale
        return scale, shift

    if y_resident:
        def kernel(x1_ref, x2_ref, w1_ref, w2_ref, g_ref, b_ref, o_ref,
                   sum_ref, sq_ref, scale_ref, shift_ref, y_ref):
            p = pl.program_id(0)
            n = pl.program_id(1)
            t = pl.program_id(2)
            first = (n == 0) & (t == 0)
            base = (n * t_blocks + t) * nb

            @pl.when((p == 0) & first)
            def _init():
                sum_ref[...] = jnp.zeros_like(sum_ref)
                sq_ref[...] = jnp.zeros_like(sq_ref)

            @pl.when(p == 0)
            def _stats():
                s = jnp.zeros((cout, 1), jnp.float32)
                q = jnp.zeros((cout, 1), jnp.float32)
                for b in range(nb):                      # static, small unroll
                    y = conv_tile(w1_ref, w2_ref, x1_ref, x2_ref, b)
                    y_ref[base + b] = y                  # park y in VMEM
                    s = s + jnp.sum(y, axis=1, keepdims=True)   # XLU slot
                    q = q + jnp.sum(y * y, axis=1, keepdims=True)
                sum_ref[...] += s
                sq_ref[...] += q

            @pl.when((p == 1) & first)
            def _fold():
                scale, shift = fold_stats(sum_ref, sq_ref, g_ref, b_ref)
                scale_ref[...] = scale
                shift_ref[...] = shift

            @pl.when(p == 1)
            def _apply():
                scale = scale_ref[...]
                shift = shift_ref[...]
                for b in range(nb):
                    y = y_ref[base + b]                  # no x re-read, no dot
                    o_ref[b] = jnp.maximum(y * scale + shift, 0.0).astype(o_ref.dtype)

        return kernel

    def kernel(x1_ref, x2_ref, w1_ref, w2_ref, g_ref, b_ref, o_ref,
               sum_ref, sq_ref, ws1_ref, ws2_ref, shift_ref):
        p = pl.program_id(0)
        n = pl.program_id(1)
        t = pl.program_id(2)
        first = (n == 0) & (t == 0)

        @pl.when((p == 0) & first)
        def _init():
            sum_ref[...] = jnp.zeros_like(sum_ref)
            sq_ref[...] = jnp.zeros_like(sq_ref)

        @pl.when(p == 0)
        def _stats():
            s = jnp.zeros((cout, 1), jnp.float32)
            q = jnp.zeros((cout, 1), jnp.float32)
            for b in range(nb):
                y = conv_tile(w1_ref, w2_ref, x1_ref, x2_ref, b)
                s = s + jnp.sum(y, axis=1, keepdims=True)
                q = q + jnp.sum(y * y, axis=1, keepdims=True)
            sum_ref[...] += s
            sq_ref[...] += q

        @pl.when((p == 1) & first)
        def _fold():
            scale, shift = fold_stats(sum_ref, sq_ref, g_ref, b_ref)
            # Fold BN scale into the conv weights: pass 1 becomes dot + shift.
            ws1_ref[...] = w1_ref[...] * scale
            ws2_ref[...] = w2_ref[...] * scale
            shift_ref[...] = shift

        @pl.when(p == 1)
        def _apply():
            shift = shift_ref[...]
            for b in range(nb):
                y = (jnp.dot(ws1_ref[...], x1_ref[b], preferred_element_type=jnp.float32)
                     + jnp.dot(ws2_ref[...], x2_ref[b], preferred_element_type=jnp.float32))
                o_ref[b] = jnp.maximum(y + shift, 0.0).astype(o_ref.dtype)

    return kernel


def fusion_conv_block(x1, x2, conv_w, conv_b, bn_gamma, bn_beta, *,
                      eps=1e-5, out_dtype=jnp.float32,
                      force_recompute=False, max_tile_lanes=32768):
    """x1: (N,C1,H,W), x2: (N,C2,H,W), conv_w: (Cout, C1+C2, 1, 1),
    conv_b / bn_gamma / bn_beta: (Cout,).  Returns (N, Cout, H, W) out_dtype."""
    del conv_b  # cancels exactly under train-mode BN mean subtraction
    N, C1, H, W = x1.shape
    C2 = x2.shape[1]
    Cout = conv_w.shape[0]
    HW = H * W
    M = N * HW                                  # true pixel count for BN stats

    # Free contiguous views of the NCHW inputs (no transposes).
    x1r = x1.reshape(N, C1, HW)
    x2r = x2.reshape(N, C2, HW)

    # Lane padding: tiled BlockSpecs need the spatial (lane) axis to be a
    # multiple of 128.  Zero padding is statistics-safe because the conv is
    # bias-free (padded lanes produce y == 0, contributing nothing to the
    # sums); inv_m uses the true pixel count and padded lanes are sliced off.
    HWp = _round_up(HW, 128)
    if HWp != HW:
        pad = HWp - HW
        x1r = jnp.pad(x1r, ((0, 0), (0, 0), (0, pad)))
        x2r = jnp.pad(x2r, ((0, 0), (0, 0), (0, pad)))

    # --- VMEM budgeting & tiling --------------------------------------------
    vmem_cap = _vmem_capacity_bytes()           # 64 MiB on v7x, 128 on v5e/v6e
    vmem_budget = max(min(int(vmem_cap * 0.75), vmem_cap - 16 * _MIB), 24 * _MIB)

    # Double-buffered input+output block bytes per lane (NB=1), with sublane pad.
    lane_bytes = 2 * 4 * (_pad8(C1) + _pad8(C2) + _pad8(Cout))
    TM = _pick_spatial_tile(HWp, lane_bytes, vmem_budget, cap=max_tile_lanes)
    T = HWp // TM
    NB = _pick_batch_block(N, HWp, TM, lane_bytes, vmem_budget)
    NBLK = N // NB

    pipe_bytes = NB * TM * lane_bytes                       # double-buffered blocks
    y_bytes = 4 * N * HWp * _pad8(Cout)                     # full conv output, f32
    misc = 2 * _MIB
    y_resident = (not force_recompute) and (pipe_bytes + y_bytes + misc) <= vmem_budget
    need = pipe_bytes + (y_bytes if y_resident else 0) + misc
    vmem_limit = int(min(vmem_budget, max(32 * _MIB, need + 4 * _MIB)))

    # Weight split along Cin so the channel concat is never materialized.
    wm = conv_w.reshape(Cout, C1 + C2).astype(jnp.float32)
    w1 = wm[:, :C1]
    w2 = wm[:, C1:]
    g2 = bn_gamma.reshape(Cout, 1).astype(jnp.float32)
    be2 = bn_beta.reshape(Cout, 1).astype(jnp.float32)

    kernel = _make_kernel(1.0 / float(M), NB, T, Cout, y_resident, eps)

    scratch = [pltpu.VMEM((Cout, 1), jnp.float32),          # sum(y)   per channel
               pltpu.VMEM((Cout, 1), jnp.float32)]          # sum(y^2) per channel
    if y_resident:
        scratch += [pltpu.VMEM((Cout, 1), jnp.float32),     # folded scale
                    pltpu.VMEM((Cout, 1), jnp.float32),     # folded shift
                    pltpu.VMEM((NBLK * T * NB, Cout, TM), jnp.float32)]  # resident y
        # Pass 1 reads y from VMEM: park the x block index so no second input
        # sweep is DMA'd from HBM (only one redundant tile fetch at the switch).
        x_map = lambda p, n, t: (n * (1 - p), 0, t * (1 - p))
    else:
        scratch += [pltpu.VMEM((Cout, C1), jnp.float32),    # scale-folded w1
                    pltpu.VMEM((Cout, C2), jnp.float32),    # scale-folded w2
                    pltpu.VMEM((Cout, 1), jnp.float32)]     # folded shift
        x_map = lambda p, n, t: (n, 0, t)

    out = pl.pallas_call(
        kernel,
        out_shape=jax.ShapeDtypeStruct((N, Cout, HWp), out_dtype),
        grid_spec=pltpu.PrefetchScalarGridSpec(
            num_scalar_prefetch=0,
            grid=(2, NBLK, T),                 # (pass, batch-block, spatial tile)
            in_specs=[
                pl.BlockSpec((NB, C1, TM), x_map),
                pl.BlockSpec((NB, C2, TM), x_map),
                pl.BlockSpec((Cout, C1), lambda p, n, t: (0, 0)),
                pl.BlockSpec((Cout, C2), lambda p, n, t: (0, 0)),
                pl.BlockSpec((Cout, 1), lambda p, n, t: (0, 0)),
                pl.BlockSpec((Cout, 1), lambda p, n, t: (0, 0)),
            ],
            # Pass 0 never writes the output: park its block index at (0,0,0).
            # Correct even if that block is written back early, because the
            # real pass-1 (0,0,0) write always lands later in program order.
            out_specs=pl.BlockSpec((NB, Cout, TM), lambda p, n, t: (n * p, 0, t * p)),
            scratch_shapes=scratch,
        ),
        compiler_params=pltpu.CompilerParams(
            # Global BN statistics live in shared VMEM scratch, so the whole
            # grid stays sequential on one TensorCore (see dual-TC TODO above).
            dimension_semantics=("arbitrary", "arbitrary", "arbitrary"),
            vmem_limit_bytes=vmem_limit,
        ),
    )(x1r, x2r, w1, w2, g2, be2)

    if HWp != HW:
        out = out[:, :, :HW]
    return out.reshape(N, Cout, H, W)


def _reference(x1, x2, w, b, gamma, beta):
    """Pure-JAX reference mirroring the PyTorch forward (training-mode BN)."""
    x = jnp.concatenate([x1, x2], axis=1)
    y = jnp.einsum("nchw,oc->nohw", x, w.reshape(w.shape[0], -1)) \
        + b[None, :, None, None]
    mean = jnp.mean(y, axis=(0, 2, 3), keepdims=True)
    var = jnp.mean((y - mean) ** 2, axis=(0, 2, 3), keepdims=True)
    y = (y - mean) / jnp.sqrt(var + 1e-5)
    y = gamma[None, :, None, None] * y + beta[None, :, None, None]
    return jnp.maximum(y, 0.0)


if __name__ == "__main__":
    def _run_case(name, N, C1, C2, H, W, out_ch, seed, **kw):
        in_ch = C1 + C2
        key = jax.random.PRNGKey(seed)
        k1, k2, k3, k4, k5, k6 = jax.random.split(key, 6)
        x1 = jax.random.normal(k1, (N, C1, H, W), dtype=jnp.float32)
        x2 = jax.random.normal(k2, (N, C2, H, W), dtype=jnp.float32)
        bound = 1.0 / (in_ch ** 0.5)
        conv_w = jax.random.uniform(k3, (out_ch, in_ch, 1, 1), jnp.float32, -bound, bound)
        conv_b = jax.random.uniform(k4, (out_ch,), jnp.float32, -bound, bound)
        bn_gamma = jax.random.uniform(k5, (out_ch,), jnp.float32, 0.5, 1.5)
        bn_beta = jax.random.uniform(k6, (out_ch,), jnp.float32, -0.5, 0.5)

        out = fusion_conv_block(x1, x2, conv_w, conv_b, bn_gamma, bn_beta, **kw)
        out = jax.block_until_ready(out)
        ref = _reference(x1, x2, conv_w, conv_b, bn_gamma, bn_beta)
        assert out.shape == (N, out_ch, H, W), name
        assert jnp.allclose(out, ref, atol=1e-4, rtol=1e-4), f"mismatch: {name}"

    # 1) Main small case (exercises the VMEM-resident-y fast path).
    _run_case("y_resident", 2, 4, 4, 16, 16, 16, seed=0)
    # 2) H*W not a multiple of 128 (lane-padding path).
    _run_case("padded", 2, 4, 4, 13, 13, 16, seed=1)
    # 3) Multi-tile grid, y-resident (forced small tile for validation).
    _run_case("multi_tile_resident", 2, 4, 4, 16, 16, 16, seed=2, max_tile_lanes=128)
    # 4) Multi-tile grid, large-problem recompute fallback (forced).
    _run_case("multi_tile_recompute", 2, 4, 4, 16, 16, 16, seed=3,
              max_tile_lanes=128, force_recompute=True)

    print("KERNEL_OK")
</pallas_src>

<mosaic_0001>
module attributes {stable_mosaic.version = 11 : i64} {
  func.func @kernel(%arg0: i32, %arg1: i32, %arg2: i32, %arg3: memref<2x4x256xf32, #tpu.memory_space<vmem>>, %arg4: memref<2x4x256xf32, #tpu.memory_space<vmem>>, %arg5: memref<16x4xf32, #tpu.memory_space<vmem>>, %arg6: memref<16x4xf32, #tpu.memory_space<vmem>>, %arg7: memref<16x1xf32, #tpu.memory_space<vmem>>, %arg8: memref<16x1xf32, #tpu.memory_space<vmem>>, %arg9: memref<2x16x256xf32, #tpu.memory_space<vmem>>, %arg10: memref<16x1xf32, #tpu.memory_space<vmem>>, %arg11: memref<16x1xf32, #tpu.memory_space<vmem>>, %arg12: memref<16x1xf32, #tpu.memory_space<vmem>>, %arg13: memref<16x1xf32, #tpu.memory_space<vmem>>, %arg14: memref<2x16x256xf32, #tpu.memory_space<vmem>>) attributes {dimension_semantics = [#tpu.dimension_semantics<arbitrary>, #tpu.dimension_semantics<arbitrary>, #tpu.dimension_semantics<arbitrary>], iteration_bounds = array<i64: 2, 1, 1>, scalar_prefetch = 0 : i64, scratch_operands = 5 : i64, tpu.core_type = #tpu.core_type<tc>, window_params = [{transform_indices = @transform_0, window_bounds = array<i64: 2, 4, 256>}, {transform_indices = @transform_1, window_bounds = array<i64: 2, 4, 256>}, {pipeline_mode = #tpu.pipeline_mode<synchronous>, transform_indices = @transform_2, window_bounds = array<i64: 16, 4>}, {pipeline_mode = #tpu.pipeline_mode<synchronous>, transform_indices = @transform_3, window_bounds = array<i64: 16, 4>}, {pipeline_mode = #tpu.pipeline_mode<synchronous>, transform_indices = @transform_4, window_bounds = array<i64: 16, 1>}, {pipeline_mode = #tpu.pipeline_mode<synchronous>, transform_indices = @transform_5, window_bounds = array<i64: 16, 1>}, {transform_indices = @transform_6, window_bounds = array<i64: 2, 16, 256>}]} {
    %c0_i32 = arith.constant 0 : i32
    %0 = arith.cmpi eq, %arg1, %c0_i32 : i32
    %c0_i32_0 = arith.constant 0 : i32
    %1 = arith.cmpi eq, %arg2, %c0_i32_0 : i32
    %2 = arith.andi %0, %1 : i1
    %c1_i32 = arith.constant 1 : i32
    %3 = arith.muli %arg1, %c1_i32 : i32
    %4 = arith.addi %3, %arg2 : i32
    %c2_i32 = arith.constant 2 : i32
    %5 = arith.muli %4, %c2_i32 : i32
    %c0_i32_1 = arith.constant 0 : i32
    %6 = arith.cmpi eq, %arg0, %c0_i32_1 : i32
    %7 = arith.andi %6, %2 : i1
    %8 = arith.extui %7 : i1 to i32
    %c0_i32_2 = arith.constant 0 : i32
    %9 = arith.cmpi ne, %8, %c0_i32_2 : i32
    scf.if %9 {
      %cst = arith.constant 0.000000e+00 : f32
      %20 = vector.broadcast %cst : f32 to vector<16x1xf32>
      %c0 = arith.constant 0 : index
      %c0_9 = arith.constant 0 : index
      %21 = vector.load %arg10[%c0, %c0_9] : memref<16x1xf32, #tpu.memory_space<vmem>>, vector<16x1xf32>
      tpu.vector_store %arg10[%c0, %c0_9], %20 {strides = array<i32>} : memref<16x1xf32, #tpu.memory_space<vmem>>, vector<16x1xf32>,
      %cst_10 = arith.constant 0.000000e+00 : f32
      %22 = vector.broadcast %cst_10 : f32 to vector<16x1xf32>
      %c0_11 = arith.constant 0 : index
      %c0_12 = arith.constant 0 : index
      %23 = vector.load %arg11[%c0_11, %c0_12] : memref<16x1xf32, #tpu.memory_space<vmem>>, vector<16x1xf32>
      tpu.vector_store %arg11[%c0_11, %c0_12], %22 {strides = array<i32>} : memref<16x1xf32, #tpu.memory_space<vmem>>, vector<16x1xf32>,
    } else {
    }
    %c0_i32_3 = arith.constant 0 : i32
    %10 = arith.cmpi eq, %arg0, %c0_i32_3 : i32
    %11 = arith.extui %10 : i1 to i32
    %c0_i32_4 = arith.constant 0 : i32
    %12 = arith.cmpi ne, %11, %c0_i32_4 : i32
    scf.if %12 {
      %cst = arith.constant 0.000000e+00 : f32
      %20 = vector.broadcast %cst : f32 to vector<16x1xf32>
      %cst_9 = arith.constant 0.000000e+00 : f32
      %21 = vector.broadcast %cst_9 : f32 to vector<16x1xf32>
      %c0 = arith.constant 0 : index
      %c0_10 = arith.constant 0 : index
      %22 = vector.load %arg5[%c0, %c0_10] : memref<16x4xf32, #tpu.memory_space<vmem>>, vector<16x4xf32>
      %c0_11 = arith.constant 0 : index
      %c0_12 = arith.constant 0 : index
      %c0_13 = arith.constant 0 : index
      %23 = vector.load %arg3[%c0_11, %c0_12, %c0_13] : memref<2x4x256xf32, #tpu.memory_space<vmem>>, vector<1x4x256xf32>
      %24 = vector.shape_cast %23 : vector<1x4x256xf32> to vector<4x256xf32>
      %cst_14 = arith.constant dense<0.000000e+00> : vector<16x256xf32>
      %25 = tpu.matmul %22, %24, %cst_14 {dimension_numbers = #tpu.dot_dimension_numbers<[1], [0], [0], [1], [0, 0, 1, 1], [], []>} : vector<16x4xf32>, vector<4x256xf32>, vector<16x256xf32> -> vector<16x256xf32>
      %c0_15 = arith.constant 0 : index
      %c0_16 = arith.constant 0 : index
      %26 = vector.load %arg6[%c0_15, %c0_16] : memref<16x4xf32, #tpu.memory_space<vmem>>, vector<16x4xf32>
      %c0_17 = arith.constant 0 : index
      %c0_18 = arith.constant 0 : index
      %c0_19 = arith.constant 0 : index
      %27 = vector.load %arg4[%c0_17, %c0_18, %c0_19] : memref<2x4x256xf32, #tpu.memory_space<vmem>>, vector<1x4x256xf32>
      %28 = vector.shape_cast %27 : vector<1x4x256xf32> to vector<4x256xf32>
      %cst_20 = arith.constant dense<0.000000e+00> : vector<16x256xf32>
      %29 = tpu.matmul %26, %28, %cst_20 {dimension_numbers = #tpu.dot_dimension_numbers<[1], [0], [0], [1], [0, 0, 1, 1], [], []>} : vector<16x4xf32>, vector<4x256xf32>, vector<16x256xf32> -> vector<16x256xf32>
      %30 = arith.addf %25, %29 : vector<16x256xf32>
      %c0_i32_21 = arith.constant 0 : i32
      %31 = arith.addi %5, %c0_i32_21 : i32
      %32 = arith.index_cast %31 : i32 to index
      %c0_22 = arith.constant 0 : index
      %c0_23 = arith.constant 0 : index
      %33 = vector.load %arg14[%32, %c0_22, %c0_23] : memref<2x16x256xf32, #tpu.memory_space<vmem>>, vector<1x16x256xf32>
      %34 = vector.shape_cast %33 : vector<1x16x256xf32> to vector<16x256xf32>
      %35 = vector.shape_cast %30 : vector<16x256xf32> to vector<1x16x256xf32>
      tpu.vector_store %arg14[%32, %c0_22, %c0_23], %35 {strides = array<i32>} : memref<2x16x256xf32, #tpu.memory_space<vmem>>, vector<1x16x256xf32>,
      %cst_24 = arith.constant dense<0.000000e+00> : vector<16xf32>
      %36 = vector.multi_reduction <add>, %30, %cst_24 [1] : vector<16x256xf32> to vector<16xf32>
      %37 = vector.shape_cast %36 : vector<16xf32> to vector<16x1xf32>
      %38 = arith.addf %20, %37 : vector<16x1xf32>
      %39 = arith.mulf %30, %30 : vector<16x256xf32>
      %cst_25 = arith.constant dense<0.000000e+00> : vector<16xf32>
      %40 = vector.multi_reduction <add>, %39, %cst_25 [1] : vector<16x256xf32> to vector<16xf32>
      %41 = vector.shape_cast %40 : vector<16xf32> to vector<16x1xf32>
      %42 = arith.addf %21, %41 : vector<16x1xf32>
      %c0_26 = arith.constant 0 : index
      %c0_27 = arith.constant 0 : index
      %43 = vector.load %arg5[%c0_26, %c0_27] : memref<16x4xf32, #tpu.memory_space<vmem>>, vector<16x4xf32>
      %c1 = arith.constant 1 : index
      %c0_28 = arith.constant 0 : index
      %c0_29 = arith.constant 0 : index
      %44 = vector.load %arg3[%c1, %c0_28, %c0_29] : memref<2x4x256xf32, #tpu.memory_space<vmem>>, vector<1x4x256xf32>
      %45 = vector.shape_cast %44 : vector<1x4x256xf32> to vector<4x256xf32>
      %cst_30 = arith.constant dense<0.000000e+00> : vector<16x256xf32>
      %46 = tpu.matmul %43, %45, %cst_30 {dimension_numbers = #tpu.dot_dimension_numbers<[1], [0], [0], [1], [0, 0, 1, 1], [], []>} : vector<16x4xf32>, vector<4x256xf32>, vector<16x256xf32> -> vector<16x256xf32>
      %c0_31 = arith.constant 0 : index
      %c0_32 = arith.constant 0 : index
      %47 = vector.load %arg6[%c0_31, %c0_32] : memref<16x4xf32, #tpu.memory_space<vmem>>, vector<16x4xf32>
      %c1_33 = arith.constant 1 : index
      %c0_34 = arith.constant 0 : index
      %c0_35 = arith.constant 0 : index
      %48 = vector.load %arg4[%c1_33, %c0_34, %c0_35] : memref<2x4x256xf32, #tpu.memory_space<vmem>>, vector<1x4x256xf32>
      %49 = vector.shape_cast %48 : vector<1x4x256xf32> to vector<4x256xf32>
      %cst_36 = arith.constant dense<0.000000e+00> : vector<16x256xf32>
      %50 = tpu.matmul %47, %49, %cst_36 {dimension_numbers = #tpu.dot_dimension_numbers<[1], [0], [0], [1], [0, 0, 1, 1], [], []>} : vector<16x4xf32>, vector<4x256xf32>, vector<16x256xf32> -> vector<16x256xf32>
      %51 = arith.addf %46, %50 : vector<16x256xf32>
      %c1_i32_37 = arith.constant 1 : i32
      %52 = arith.addi %5, %c1_i32_37 : i32
      %53 = arith.index_cast %52 : i32 to index
      %c0_38 = arith.constant 0 : index
      %c0_39 = arith.constant 0 : index
      %54 = vector.load %arg14[%53, %c0_38, %c0_39] : memref<2x16x256xf32, #tpu.memory_space<vmem>>, vector<1x16x256xf32>
      %55 = vector.shape_cast %54 : vector<1x16x256xf32> to vector<16x256xf32>
      %56 = vector.shape_cast %51 : vector<16x256xf32> to vector<1x16x256xf32>
      tpu.vector_store %arg14[%53, %c0_38, %c0_39], %56 {strides = array<i32>} : memref<2x16x256xf32, #tpu.memory_space<vmem>>, vector<1x16x256xf32>,
      %cst_40 = arith.constant dense<0.000000e+00> : vector<16xf32>
      %57 = vector.multi_reduction <add>, %51, %cst_40 [1] : vector<16x256xf32> to vector<16xf32>
      %58 = vector.shape_cast %57 : vector<16xf32> to vector<16x1xf32>
      %59 = arith.addf %38, %58 : vector<16x1xf32>
      %60 = arith.mulf %51, %51 : vector<16x256xf32>
      %cst_41 = arith.constant dense<0.000000e+00> : vector<16xf32>
      %61 = vector.multi_reduction <add>, %60, %cst_41 [1] : vector<16x256xf32> to vector<16xf32>
      %62 = vector.shape_cast %61 : vector<16xf32> to vector<16x1xf32>
      %63 = arith.addf %42, %62 : vector<16x1xf32>
      %c0_42 = arith.constant 0 : index
      %c0_43 = arith.constant 0 : index
      %64 = vector.load %arg10[%c0_42, %c0_43] : memref<16x1xf32, #tpu.memory_space<vmem>>, vector<16x1xf32>
      %65 = arith.addf %64, %59 : vector<16x1xf32>
      %c0_44 = arith.constant 0 : index
      %c0_45 = arith.constant 0 : index
      %66 = vector.load %arg10[%c0_44, %c0_45] : memref<16x1xf32, #tpu.memory_space<vmem>>, vector<16x1xf32>
      tpu.vector_store %arg10[%c0_44, %c0_45], %65 {strides = array<i32>} : memref<16x1xf32, #tpu.memory_space<vmem>>, vector<16x1xf32>,
      %c0_46 = arith.constant 0 : index
      %c0_47 = arith.constant 0 : index
      %67 = vector.load %arg11[%c0_46, %c0_47] : memref<16x1xf32, #tpu.memory_space<vmem>>, vector<16x1xf32>
      %68 = arith.addf %67, %63 : vector<16x1xf32>
      %c0_48 = arith.constant 0 : index
      %c0_49 = arith.constant 0 : index
      %69 = vector.load %arg11[%c0_48, %c0_49] : memref<16x1xf32, #tpu.memory_space<vmem>>, vector<16x1xf32>
      tpu.vector_store %arg11[%c0_48, %c0_49], %68 {strides = array<i32>} : memref<16x1xf32, #tpu.memory_space<vmem>>, vector<16x1xf32>,
    } else {
    }
    %c1_i32_5 = arith.constant 1 : i32
    %13 = arith.cmpi eq, %arg0, %c1_i32_5 : i32
    %14 = arith.andi %13, %2 : i1
    %15 = arith.extui %14 : i1 to i32
    %c0_i32_6 = arith.constant 0 : i32
    %16 = arith.cmpi ne, %15, %c0_i32_6 : i32
    scf.if %16 {
      %c0 = arith.constant 0 : index
      %c0_9 = arith.constant 0 : index
      %20 = vector.load %arg10[%c0, %c0_9] : memref<16x1xf32, #tpu.memory_space<vmem>>, vector<16x1xf32>
      %cst = arith.constant 0.001953125 : f32
      %21 = vector.broadcast %cst : f32 to vector<16x1xf32>
      %22 = arith.mulf %20, %21 : vector<16x1xf32>
      %c0_10 = arith.constant 0 : index
      %c0_11 = arith.constant 0 : index
      %23 = vector.load %arg11[%c0_10, %c0_11] : memref<16x1xf32, #tpu.memory_space<vmem>>, vector<16x1xf32>
      %cst_12 = arith.constant 0.001953125 : f32
      %24 = vector.broadcast %cst_12 : f32 to vector<16x1xf32>
      %25 = arith.mulf %23, %24 : vector<16x1xf32>
      %26 = arith.mulf %22, %22 : vector<16x1xf32>
      %27 = arith.subf %25, %26 : vector<16x1xf32>
      %c0_13 = arith.constant 0 : index
      %c0_14 = arith.constant 0 : index
      %28 = vector.load %arg7[%c0_13, %c0_14] : memref<16x1xf32, #tpu.memory_space<vmem>>, vector<16x1xf32>
      %cst_15 = arith.constant 9.99999974E-6 : f32
      %29 = vector.broadcast %cst_15 : f32 to vector<16x1xf32>
      %30 = arith.addf %27, %29 : vector<16x1xf32>
      %31 = math.rsqrt %30 : vector<16x1xf32>
      %32 = arith.mulf %28, %31 : vector<16x1xf32>
      %c0_16 = arith.constant 0 : index
      %c0_17 = arith.constant 0 : index
      %33 = vector.load %arg8[%c0_16, %c0_17] : memref<16x1xf32, #tpu.memory_space<vmem>>, vector<16x1xf32>
      %34 = arith.mulf %22, %32 : vector<16x1xf32>
      %35 = arith.subf %33, %34 : vector<16x1xf32>
      %c0_18 = arith.constant 0 : index
      %c0_19 = arith.constant 0 : index
      %36 = vector.load %arg12[%c0_18, %c0_19] : memref<16x1xf32, #tpu.memory_space<vmem>>, vector<16x1xf32>
      tpu.vector_store %arg12[%c0_18, %c0_19], %32 {strides = array<i32>} : memref<16x1xf32, #tpu.memory_space<vmem>>, vector<16x1xf32>,
      %c0_20 = arith.constant 0 : index
      %c0_21 = arith.constant 0 : index
      %37 = vector.load %arg13[%c0_20, %c0_21] : memref<16x1xf32, #tpu.memory_space<vmem>>, vector<16x1xf32>
      tpu.vector_store %arg13[%c0_20, %c0_21], %35 {strides = array<i32>} : memref<16x1xf32, #tpu.memory_space<vmem>>, vector<16x1xf32>,
    } else {
    }
    %c1_i32_7 = arith.constant 1 : i32
    %17 = arith.cmpi eq, %arg0, %c1_i32_7 : i32
    %18 = arith.extui %17 : i1 to i32
    %c0_i32_8 = arith.constant 0 : i32
    %19 = arith.cmpi ne, %18, %c0_i32_8 : i32
    scf.if %19 {
      %c0 = arith.constant 0 : index
      %c0_9 = arith.constant 0 : index
      %20 = vector.load %arg12[%c0, %c0_9] : memref<16x1xf32, #tpu.memory_space<vmem>>, vector<16x1xf32>
      %c0_10 = arith.constant 0 : index
      %c0_11 = arith.constant 0 : index
      %21 = vector.load %arg13[%c0_10, %c0_11] : memref<16x1xf32, #tpu.memory_space<vmem>>, vector<16x1xf32>
      %c0_i32_12 = arith.constant 0 : i32
      %22 = arith.addi %5, %c0_i32_12 : i32
      %23 = arith.index_cast %22 : i32 to index
      %c0_13 = arith.constant 0 : index
      %c0_14 = arith.constant 0 : index
      %24 = vector.load %arg14[%23, %c0_13, %c0_14] : memref<2x16x256xf32, #tpu.memory_space<vmem>>, vector<1x16x256xf32>
      %25 = vector.shape_cast %24 : vector<1x16x256xf32> to vector<16x256xf32>
      %26 = vector.broadcast %20 : vector<16x1xf32> to vector<16x256xf32>
      %27 = arith.mulf %25, %26 : vector<16x256xf32>
      %28 = vector.broadcast %21 : vector<16x1xf32> to vector<16x256xf32>
      %29 = arith.addf %27, %28 : vector<16x256xf32>
      %cst = arith.constant 0.000000e+00 : f32
      %30 = vector.broadcast %cst : f32 to vector<16x256xf32>
      %31 = arith.maximumf %29, %30 : vector<16x256xf32>
      %c0_15 = arith.constant 0 : index
      %c0_16 = arith.constant 0 : index
      %c0_17 = arith.constant 0 : index
      %32 = vector.load %arg9[%c0_15, %c0_16, %c0_17] : memref<2x16x256xf32, #tpu.memory_space<vmem>>, vector<1x16x256xf32>
      %33 = vector.shape_cast %32 : vector<1x16x256xf32> to vector<16x256xf32>
      %34 = vector.shape_cast %31 : vector<16x256xf32> to vector<1x16x256xf32>
      tpu.vector_store %arg9[%c0_15, %c0_16, %c0_17], %34 {strides = array<i32>} : memref<2x16x256xf32, #tpu.memory_space<vmem>>, vector<1x16x256xf32>,
      %c1_i32_18 = arith.constant 1 : i32
      %35 = arith.addi %5, %c1_i32_18 : i32
      %36 = arith.index_cast %35 : i32 to index
      %c0_19 = arith.constant 0 : index
      %c0_20 = arith.constant 0 : index
      %37 = vector.load %arg14[%36, %c0_19, %c0_20] : memref<2x16x256xf32, #tpu.memory_space<vmem>>, vector<1x16x256xf32>
      %38 = vector.shape_cast %37 : vector<1x16x256xf32> to vector<16x256xf32>
      %39 = vector.broadcast %20 : vector<16x1xf32> to vector<16x256xf32>
      %40 = arith.mulf %38, %39 : vector<16x256xf32>
      %41 = vector.broadcast %21 : vector<16x1xf32> to vector<16x256xf32>
      %42 = arith.addf %40, %41 : vector<16x256xf32>
      %cst_21 = arith.constant 0.000000e+00 : f32
      %43 = vector.broadcast %cst_21 : f32 to vector<16x256xf32>
      %44 = arith.maximumf %42, %43 : vector<16x256xf32>
      %c1 = arith.constant 1 : index
      %c0_22 = arith.constant 0 : index
      %c0_23 = arith.constant 0 : index
      %45 = vector.load %arg9[%c1, %c0_22, %c0_23] : memref<2x16x256xf32, #tpu.memory_space<vmem>>, vector<1x16x256xf32>
      %46 = vector.shape_cast %45 : vector<1x16x256xf32> to vector<16x256xf32>
      %47 = vector.shape_cast %44 : vector<16x256xf32> to vector<1x16x256xf32>
      tpu.vector_store %arg9[%c1, %c0_22, %c0_23], %47 {strides = array<i32>} : memref<2x16x256xf32, #tpu.memory_space<vmem>>, vector<1x16x256xf32>,
    } else {
    }
    return
  }
  func.func @transform_0(%arg0: i32, %arg1: i32, %arg2: i32) -> (i32, i32, i32) {
    %c1_i32 = arith.constant 1 : i32
    %0 = arith.subi %c1_i32, %arg0 : i32
    %1 = arith.muli %arg1, %0 : i32
    %c1_i32_0 = arith.constant 1 : i32
    %2 = arith.subi %c1_i32_0, %arg0 : i32
    %3 = arith.muli %arg2, %2 : i32
    %c0_i32 = arith.constant 0 : i32
    %c0_i32_1 = arith.constant 0 : i32
    return %1, %c0_i32, %3 : i32, i32, i32
  }
  func.func @transform_1(%arg0: i32, %arg1: i32, %arg2: i32) -> (i32, i32, i32) {
    %c1_i32 = arith.constant 1 : i32
    %0 = arith.subi %c1_i32, %arg0 : i32
    %1 = arith.muli %arg1, %0 : i32
    %c1_i32_0 = arith.constant 1 : i32
    %2 = arith.subi %c1_i32_0, %arg0 : i32
    %3 = arith.muli %arg2, %2 : i32
    %c0_i32 = arith.constant 0 : i32
    %c0_i32_1 = arith.constant 0 : i32
    return %1, %c0_i32, %3 : i32, i32, i32
  }
  func.func @transform_2(%arg0: i32, %arg1: i32, %arg2: i32) -> (i32, i32) {
    %c0_i32 = arith.constant 0 : i32
    %c0_i32_0 = arith.constant 0 : i32
    %c0_i32_1 = arith.constant 0 : i32
    return %c0_i32, %c0_i32_0 : i32, i32
  }
  func.func @transform_3(%arg0: i32, %arg1: i32, %arg2: i32) -> (i32, i32) {
    %c0_i32 = arith.constant 0 : i32
    %c0_i32_0 = arith.constant 0 : i32
    %c0_i32_1 = arith.constant 0 : i32
    return %c0_i32, %c0_i32_0 : i32, i32
  }
  func.func @transform_4(%arg0: i32, %arg1: i32, %arg2: i32) -> (i32, i32) {
    %c0_i32 = arith.constant 0 : i32
    %c0_i32_0 = arith.constant 0 : i32
    %c0_i32_1 = arith.constant 0 : i32
    return %c0_i32, %c0_i32_0 : i32, i32
  }
  func.func @transform_5(%arg0: i32, %arg1: i32, %arg2: i32) -> (i32, i32) {
    %c0_i32 = arith.constant 0 : i32
    %c0_i32_0 = arith.constant 0 : i32
    %c0_i32_1 = arith.constant 0 : i32
    return %c0_i32, %c0_i32_0 : i32, i32
  }
  func.func @transform_6(%arg0: i32, %arg1: i32, %arg2: i32) -> (i32, i32, i32) {
    %0 = arith.muli %arg1, %arg0 : i32
    %1 = arith.muli %arg2, %arg0 : i32
    %c0_i32 = arith.constant 0 : i32
    %c0_i32_0 = arith.constant 0 : i32
    return %0, %c0_i32, %1 : i32, i32, i32
  }
}

</mosaic_0001>

<llo_original>
// kernel: tpu_custom_call.1
$region0: #{tpu_custom_call.1}
  #allocation0 [shape = 'u32[]', space=smem, size = 0x4, offset = 0x4, fixed_abs, tag = 'smem constant byte address 0x4 - core index']
  #allocation1 [shape = 'u32[72,128]{1,0:T(1,128)}', space=vmem, size = 0x9000, scoped, tag = 'internal scratch']
  #allocation2 [shape = 'f32[16,1]{1,0:T(8,128)}', space=vmem, size = 0x2000, scoped, tag = 'scratch operand']
  #allocation3 [shape = 'f32[16,1]{1,0:T(8,128)}', space=vmem, size = 0x2000, scoped, tag = 'scratch operand']
  #allocation4 [shape = 'f32[16,1]{1,0:T(8,128)}', space=vmem, size = 0x2000, scoped, tag = 'scratch operand']
  #allocation5 [shape = 'f32[16,1]{1,0:T(8,128)}', space=vmem, size = 0x2000, scoped, tag = 'scratch operand']
  #allocation6 [shape = 'f32[2,16,256]{2,1,0:T(8,128)}', space=vmem, size = 0x8000, scoped, tag = 'scratch operand']
  %s0 = inlined_call_operand.vmem [shape: f32[2,4,256], index: 0, kind: input, shape index: {}]
  %s1 = inlined_call_operand.vmem [shape: f32[2,4,256], index: 1, kind: input, shape index: {}]
  %s2 = inlined_call_operand.vmem [shape: f32[16,4], index: 2, kind: input, shape index: {}]
  %s3 = inlined_call_operand.vmem [shape: f32[16,4], index: 3, kind: input, shape index: {}]
  %s4 = inlined_call_operand.vmem [shape: f32[16,1], index: 4, kind: input, shape index: {}]
  %s5 = inlined_call_operand.vmem [shape: f32[16,1], index: 5, kind: input, shape index: {}]
  %s6 = inlined_call_operand.hbm [shape: f32[2,16,256], index: 6, kind: output, shape index: {}]
  %s7 = sld [smem:[#allocation0]]
  $region73: #{tpu_custom_call.1} parent=0
    _
  %s9 = ssub.s32 1, %s7
  %s10 = scalar_select 0, %s9, %s7
  $region1: #{tpu_custom_call.1} parent=0
    #allocation7 [shape = 'u8[65536]{0}', space=vmem, size = 0x10000, scoped, tag = 'output window, operand 0']
    #allocation8 [shape = 's32[2]{0}', space=sflag, size = 0x8, scoped, tag = 'scoped memory for tpu_custom_call.1']
    %11 = vsyncpa [#allocation8], 0
    %s12 = scalar_lea.sflag [#allocation8], 1
    %13 = vsyncpa %s12, 0
    loop: start=0, step=1, limit=4
    $region2: #{tpu_custom_call.1} parent=1 // loop_pre_header
      _
    $region3: #{tpu_custom_call.1} parent=1 // loop_header
      %s15 = sphi 0, %s19
      %p16 = scmp.ge.s32.totalorder %s15, 4
      %s22 = sphi 0, %s41
      %s23 = sphi 0, %s37
      %s24 = sphi 0, %s33
      %s25 = sphi 0, %s22
      %s26 = sphi 0, %s23
      %s27 = sphi 0, %s24
      %s28 = sphi 0, %s25
      %s29 = sphi 0, %s26
      %s30 = sphi 0, %s27
      %s52 = sphi 0, %s54
      %s55 = sphi 0, %s52
      %s56 = sphi 0, %s55
      %s72 = sphi 0, %s56
      %s86 = sphi 0, %s88
      %s89 = sphi 0, %s86
      %s90 = sphi 0, %s89
      %s106 = sphi 0, %s90
      %s110 = sphi 0, %s110
      %s112 = sphi 0, %s110
      %s113 = sphi 0, %s112
      %s127 = sphi 0, %s113
      %s131 = sphi 0, %s131
      %s133 = sphi 0, %s131
      %s134 = sphi 0, %s133
      %s148 = sphi 0, %s134
      %s152 = sphi 0, %s152
      %s154 = sphi 0, %s152
      %s155 = sphi 0, %s154
      %s169 = sphi 0, %s155
      %s173 = sphi 0, %s173
      %s175 = sphi 0, %s173
      %s176 = sphi 0, %s175
      %s190 = sphi 0, %s176
      %s202 = sphi 0, %s204
      %s205 = sphi 0, %s202
      %s206 = sphi 0, %s205
      %s222 = sphi 0, %s206
    $region4: #{tpu_custom_call.1} parent=1 // loop_header_branch
      %18 = sbr.rel (%p16) target = $region8
    $region5: #{tpu_custom_call.1} parent=1 // loop_body
      %s20 = ssub.s32 %s15, 1
      %s21 = ssub.s32 %s15, 2
      %s31 = sadd.s32 1, %s24
      %p32 = scmp.ge.s32.totalorder %s31, 1
      %s33 = scalar_select %p32, 0, %s31
      %s34 = sadd.s32 1, %s23
      %s35 = scalar_select %p32, %s34, %s23
      %p36 = scmp.ge.s32.totalorder %s35, 1
      %s37 = scalar_select %p36, 0, %s35
      %s38 = sadd.s32 1, %s22
      %s39 = scalar_select %p36, %s38, %s22
      %p40 = scmp.ge.s32.totalorder %s39, 2
      %s41 = scalar_select %p40, 0, %s39
      %s42 = ssub.s32 1, %s22
      %s43 = smul.u32 %s23, %s42
      %s44 = smul.u32 %s24, %s42
      %s45 = ssub.s32 1, %s41
      %s46 = smul.u32 %s37, %s45
      %s47 = smul.u32 %s33, %s45
      %s48 = ssub.s32 %s43, %s46
      %s49 = ssub.s32 %s44, %s47
      %s50 = sor.u32 %s48, %s49
      %p51 = scmp.eq.s32.totalorder %s50, 0
      %s53 = sadd.s32 %s52, 1
      %s54 = scalar_select %p51, %s52, %s53
      %p57 = pneg %p51
      %p58 = scmp.eq.s32.totalorder %s15, 1
      %p59 = por %p57, %p58
      %p60 = scmp.ne.s32.totalorder %s52, %s55
      %p61 = scmp.eq.s32.totalorder %s15, 0
      %p62 = por %p60, %p61
      %p63 = scmp.ne.s32.totalorder %s52, %s55
      %p64 = scmp.eq.s32.totalorder %s20, 1
      %p65 = por %p63, %p64
      %p66 = scmp.ne.s32.totalorder %s55, %s56
      %p67 = scmp.eq.s32.totalorder %s20, 0
      %p68 = por %p66, %p67
      %p69 = scmp.ne.s32.totalorder %s55, %s56
      %p70 = scmp.eq.s32.totalorder %s21, 1
      %p71 = por %p69, %p70
      %p73 = scmp.ne.s32.totalorder %s56, %s72
      %p74 = scmp.eq.s32.totalorder %s21, 0
      %p75 = por %p73, %p74
      %s76 = ssub.s32 1, %s22
      %s77 = smul.u32 %s23, %s76
      %s78 = smul.u32 %s24, %s76
      %s79 = ssub.s32 1, %s41
      %s80 = smul.u32 %s37, %s79
      %s81 = smul.u32 %s33, %s79
      %s82 = ssub.s32 %s77, %s80
      %s83 = ssub.s32 %s78, %s81
      %s84 = sor.u32 %s82, %s83
      %p85 = scmp.eq.s32.totalorder %s84, 0
      %s87 = sadd.s32 %s86, 1
      %s88 = scalar_select %p85, %s86, %s87
      %p91 = pneg %p85
      %p92 = scmp.eq.s32.totalorder %s15, 1
      %p93 = por %p91, %p92
      %p94 = scmp.ne.s32.totalorder %s86, %s89
      %p95 = scmp.eq.s32.totalorder %s15, 0
      %p96 = por %p94, %p95
      %p97 = scmp.ne.s32.totalorder %s86, %s89
      %p98 = scmp.eq.s32.totalorder %s20, 1
      %p99 = por %p97, %p98
      %p100 = scmp.ne.s32.totalorder %s89, %s90
      %p101 = scmp.eq.s32.totalorder %s20, 0
      %p102 = por %p100, %p101
      %p103 = scmp.ne.s32.totalorder %s89, %s90
      %p104 = scmp.eq.s32.totalorder %s21, 1
      %p105 = por %p103, %p104
      %p107 = scmp.ne.s32.totalorder %s90, %s106
      %p108 = scmp.eq.s32.totalorder %s21, 0
      %p109 = por %p107, %p108
      %s111 = sadd.s32 %s110, 1
      %p114 = scmp.eq.s32.totalorder %s15, 1
      %p115 = scmp.ne.s32.totalorder %s110, %s112
      %p116 = scmp.eq.s32.totalorder %s15, 0
      %p117 = por %p115, %p116
      %p118 = scmp.ne.s32.totalorder %s110, %s112
      %p119 = scmp.eq.s32.totalorder %s20, 1
      %p120 = por %p118, %p119
      %p121 = scmp.ne.s32.totalorder %s112, %s113
      %p122 = scmp.eq.s32.totalorder %s20, 0
      %p123 = por %p121, %p122
      %p124 = scmp.ne.s32.totalorder %s112, %s113
      %p125 = scmp.eq.s32.totalorder %s21, 1
      %p126 = por %p124, %p125
      %p128 = scmp.ne.s32.totalorder %s113, %s127
      %p129 = scmp.eq.s32.totalorder %s21, 0
      %p130 = por %p128, %p129
      %s132 = sadd.s32 %s131, 1
      %p135 = scmp.eq.s32.totalorder %s15, 1
      %p136 = scmp.ne.s32.totalorder %s131, %s133
      %p137 = scmp.eq.s32.totalorder %s15, 0
      %p138 = por %p136, %p137
      %p139 = scmp.ne.s32.totalorder %s131, %s133
      %p140 = scmp.eq.s32.totalorder %s20, 1
      %p141 = por %p139, %p140
      %p142 = scmp.ne.s32.totalorder %s133, %s134
      %p143 = scmp.eq.s32.totalorder %s20, 0
      %p144 = por %p142, %p143
      %p145 = scmp.ne.s32.totalorder %s133, %s134
      %p146 = scmp.eq.s32.totalorder %s21, 1
      %p147 = por %p145, %p146
      %p149 = scmp.ne.s32.totalorder %s134, %s148
      %p150 = scmp.eq.s32.totalorder %s21, 0
      %p151 = por %p149, %p150
      %s153 = sadd.s32 %s152, 1
      %p156 = scmp.eq.s32.totalorder %s15, 1
      %p157 = scmp.ne.s32.totalorder %s152, %s154
      %p158 = scmp.eq.s32.totalorder %s15, 0
      %p159 = por %p157, %p158
      %p160 = scmp.ne.s32.totalorder %s152, %s154
      %p161 = scmp.eq.s32.totalorder %s20, 1
      %p162 = por %p160, %p161
      %p163 = scmp.ne.s32.totalorder %s154, %s155
      %p164 = scmp.eq.s32.totalorder %s20, 0
      %p165 = por %p163, %p164
      %p166 = scmp.ne.s32.totalorder %s154, %s155
      %p167 = scmp.eq.s32.totalorder %s21, 1
      %p168 = por %p166, %p167
      %p170 = scmp.ne.s32.totalorder %s155, %s169
      %p171 = scmp.eq.s32.totalorder %s21, 0
      %p172 = por %p170, %p171
      %s174 = sadd.s32 %s173, 1
      %p177 = scmp.eq.s32.totalorder %s15, 1
      %p178 = scmp.ne.s32.totalorder %s173, %s175
      %p179 = scmp.eq.s32.totalorder %s15, 0
      %p180 = por %p178, %p179
      %p181 = scmp.ne.s32.totalorder %s173, %s175
      %p182 = scmp.eq.s32.totalorder %s20, 1
      %p183 = por %p181, %p182
      %p184 = scmp.ne.s32.totalorder %s175, %s176
      %p185 = scmp.eq.s32.totalorder %s20, 0
      %p186 = por %p184, %p185
      %p187 = scmp.ne.s32.totalorder %s175, %s176
      %p188 = scmp.eq.s32.totalorder %s21, 1
      %p189 = por %p187, %p188
      %p191 = scmp.ne.s32.totalorder %s176, %s190
      %p192 = scmp.eq.s32.totalorder %s21, 0
      %p193 = por %p191, %p192
      %s194 = smul.u32 %s23, %s22
      %s195 = smul.u32 %s24, %s22
      %s196 = smul.u32 %s37, %s41
      %s197 = smul.u32 %s33, %s41
      %s198 = ssub.s32 %s194, %s196
      %s199 = ssub.s32 %s195, %s197
      %s200 = sor.u32 %s198, %s199
      %p201 = scmp.eq.s32.totalorder %s200, 0
      %s203 = sadd.s32 %s202, 1
      %s204 = scalar_select %p201, %s202, %s203
      %p207 = pneg %p201
      %p208 = scmp.eq.s32.totalorder %s15, 1
      %p209 = por %p207, %p208
      %p210 = scmp.ne.s32.totalorder %s202, %s205
      %p211 = scmp.eq.s32.totalorder %s15, 0
      %p212 = por %p210, %p211
      %p213 = scmp.ne.s32.totalorder %s202, %s205
      %p214 = scmp.eq.s32.totalorder %s20, 1
      %p215 = por %p213, %p214
      %p216 = scmp.ne.s32.totalorder %s205, %s206
      %p217 = scmp.eq.s32.totalorder %s20, 0
      %p218 = por %p216, %p217
      %p219 = scmp.ne.s32.totalorder %s205, %s206
      %p220 = scmp.eq.s32.totalorder %s21, 1
      %p221 = por %p219, %p220
      %p223 = scmp.ne.s32.totalorder %s206, %s222
      %p224 = scmp.eq.s32.totalorder %s21, 0
      %p225 = por %p223, %p224
      %p226 = scmp.le.s32.totalorder 1, %s15
      %p227 = scmp.lt.s32.totalorder %s15, 3
      %p228 = pnand %p226, %p227
      %p229 = pneg %p228
      // Predicated region
      $region9: #{tpu_custom_call.1} parent=5 // pred_check
        _
      $region10: #{tpu_custom_call.1} parent=5 // pred_check_branch
        %231 = sbr.rel (%p228) target = $region12
      $region11: #{tpu_custom_call.1} parent=5 // pred_region
        %s232 = ssub.s32 %s15, 1
        // Predicated region
        $region13: #{tpu_custom_call.1} parent=11 // pred_check
          %p233 = pneg %p123
        $region14: #{tpu_custom_call.1} parent=11 // pred_check_branch
          %235 = sbr.rel (%p233) target = $region16
        $region15: #{tpu_custom_call.1} parent=11 // pred_region
          _
        $region16: #{tpu_custom_call.1} parent=11 // pred_fallthru
          _
        // Predicated region
        $region17: #{tpu_custom_call.1} parent=11 // pred_check
          %p236 = pneg %p144
        $region18: #{tpu_custom_call.1} parent=11 // pred_check_branch
          %238 = sbr.rel (%p236) target = $region20
        $region19: #{tpu_custom_call.1} parent=11 // pred_region
          _
        $region20: #{tpu_custom_call.1} parent=11 // pred_fallthru
          _
        // Predicated region
        $region21: #{tpu_custom_call.1} parent=11 // pred_check
          %p239 = pneg %p165
        $region22: #{tpu_custom_call.1} parent=11 // pred_check_branch
          %241 = sbr.rel (%p239) target = $region24
        $region23: #{tpu_custom_call.1} parent=11 // pred_region
          _
        $region24: #{tpu_custom_call.1} parent=11 // pred_fallthru
          _
        // Predicated region
        $region25: #{tpu_custom_call.1} parent=11 // pred_check
          %p242 = pneg %p186
        $region26: #{tpu_custom_call.1} parent=11 // pred_check_branch
          %244 = sbr.rel (%p242) target = $region28
        $region27: #{tpu_custom_call.1} parent=11 // pred_region
          _
        $region28: #{tpu_custom_call.1} parent=11 // pred_fallthru
          _
      $region12: #{tpu_custom_call.1} parent=5 // pred_fallthru
        _
      %p245 = scmp.lt.s32.totalorder %s15, 2
      // Predicated region
      $region29: #{tpu_custom_call.1} parent=5 // pred_check
        %p246 = pneg %p245
      $region30: #{tpu_custom_call.1} parent=5 // pred_check_branch
        %248 = sbr.rel (%p246) target = $region32
      $region31: #{tpu_custom_call.1} parent=5 // pred_region
        // Predicated region
        $region33: #{tpu_custom_call.1} parent=31 // pred_check
          %p249 = pneg %p62
        $region34: #{tpu_custom_call.1} parent=31 // pred_check_branch
          %251 = sbr.rel (%p249) target = $region36
        $region35: #{tpu_custom_call.1} parent=31 // pred_region
          %s252 = ssub.s32 1, %s22
          %s253 = smul.u32 %s23, %s252
          %s254 = smul.u32 %s24, %s252
          %s255 = smul.u32 2, %s253
          %s256 = smul.u32 2, %s254
          %p257 = scmp.lt.s32.totalorder %s255, 1
          %s258 = scalar_select %p257, %s255, 1
          %p259 = scmp.lt.s32.totalorder %s256, 1
          %s260 = scalar_select %p259, %s256, 1
          %s261 = smul.addr %s258, 2
          %s262 = sadd.s32 %s260, %s261
          %s263 = smul.addr %s262, 4
          %s264 = scalar_lea.vmem %s0, %s263
          %s265 = ssub.s32 1, %s22
          %s266 = smul.u32 %s23, %s265
          %s267 = smul.u32 %s24, %s265
          %s268 = smul.u32 2, %s266
          %s269 = smul.u32 2, %s267
        $region36: #{tpu_custom_call.1} parent=31 // pred_fallthru
          _
        // Predicated region
        $region37: #{tpu_custom_call.1} parent=31 // pred_check
          %p270 = pneg %p96
        $region38: #{tpu_custom_call.1} parent=31 // pred_check_branch
          %272 = sbr.rel (%p270) target = $region40
        $region39: #{tpu_custom_call.1} parent=31 // pred_region
          %s273 = ssub.s32 1, %s22
          %s274 = smul.u32 %s23, %s273
          %s275 = smul.u32 %s24, %s273
          %s276 = smul.u32 2, %s274
          %s277 = smul.u32 2, %s275
          %p278 = scmp.lt.s32.totalorder %s276, 1
          %s279 = scalar_select %p278, %s276, 1
          %p280 = scmp.lt.s32.totalorder %s277, 1
          %s281 = scalar_select %p280, %s277, 1
          %s282 = smul.addr %s279, 2
          %s283 = sadd.s32 %s281, %s282
          %s284 = smul.addr %s283, 4
          %s285 = scalar_lea.vmem %s1, %s284
          %s286 = ssub.s32 1, %s22
          %s287 = smul.u32 %s23, %s286
          %s288 = smul.u32 %s24, %s286
          %s289 = smul.u32 2, %s287
          %s290 = smul.u32 2, %s288
        $region40: #{tpu_custom_call.1} parent=31 // pred_fallthru
          _
      $region32: #{tpu_custom_call.1} parent=5 // pred_fallthru
        _
      %p291 = scmp.le.s32.totalorder 1, %s15
      %p292 = scmp.lt.s32.totalorder %s15, 3
      %p293 = pnand %p291, %p292
      %p294 = pneg %p293
      // Predicated region
      $region41: #{tpu_custom_call.1} parent=5 // pred_check
        _
      $region42: #{tpu_custom_call.1} parent=5 // pred_check_branch
        %296 = sbr.rel (%p293) target = $region44
      $region43: #{tpu_custom_call.1} parent=5 // pred_region
        %s297 = ssub.s32 %s15, 1
        %s298 = ssub.s32 1, %s25
        %s299 = smul.u32 %s26, %s298
        %s300 = smul.u32 %s27, %s298
        %s301 = smul.u32 2, %s299
        %s302 = smul.u32 2, %s300
        %p303 = scmp.lt.s32.totalorder %s301, 1
        %s304 = scalar_select %p303, %s301, 1
        %p305 = scmp.lt.s32.totalorder %s302, 1
        %s306 = scalar_select %p305, %s302, 1
        %s307 = smul.addr %s304, 2
        %s308 = sadd.s32 %s306, %s307
        %s309 = smul.addr %s308, 4
        %s310 = scalar_lea.vmem %s0, %s309
        %p311 = pneg %p68
        %p312 = pneg %p65
        %s313 = ssub.s32 1, %s25
        %s314 = smul.u32 %s26, %s313
        %s315 = smul.u32 %s27, %s313
        %s316 = smul.u32 2, %s314
        %s317 = smul.u32 2, %s315
        %p318 = scmp.lt.s32.totalorder %s316, 1
        %s319 = scalar_select %p318, %s316, 1
        %p320 = scmp.lt.s32.totalorder %s317, 1
        %s321 = scalar_select %p320, %s317, 1
        %s322 = smul.addr %s319, 2
        %s323 = sadd.s32 %s321, %s322
        %s324 = smul.addr %s323, 4
        %s325 = scalar_lea.vmem %s1, %s324
        %p326 = pneg %p102
        %p327 = pneg %p99
        %p328 = pneg %p123
        %p329 = pneg %p120
        %p330 = pneg %p144
        %p331 = pneg %p141
        %p332 = pneg %p165
        %p333 = pneg %p162
        %p334 = pneg %p186
        %p335 = pneg %p183
        %p336 = pneg %p218
        %p337 = pneg %p215
        %s338 = sand.u32 %s205, 1
        %s339 = scalar_lea.sflag [#allocation8], %s338
        %s340 = sand.u32 %s205, 1
        %s341 = smul.addr %s340, 64
        %s342 = scalar_lea.vmem [#allocation7], %s341
        %s343 = ssub.s32 1, %s25
        %s344 = smul.u32 %s26, %s343
        %s345 = smul.u32 %s27, %s343
        %s346 = smul.u32 2, %s344
        %s347 = smul.u32 2, %s345
        %p348 = scmp.lt.s32.totalorder %s346, 1
        %s349 = scalar_select %p348, %s346, 1
        %p350 = scmp.lt.s32.totalorder %s347, 1
        %s351 = scalar_select %p350, %s347, 1
        %s352 = smul.addr %s349, 2
        %s353 = sadd.s32 %s351, %s352
        %s354 = smul.addr %s353, 4
        %s355 = scalar_lea.vmem %s0, %s354
        %s356 = ssub.s32 1, %s25
        %s357 = smul.u32 %s26, %s356
        %s358 = smul.u32 %s27, %s356
        %s359 = smul.u32 2, %s357
        %s360 = smul.u32 2, %s358
        %s361 = ssub.s32 1, %s25
        %s362 = smul.u32 %s26, %s361
        %s363 = smul.u32 %s27, %s361
        %s364 = smul.u32 2, %s362
        %s365 = smul.u32 2, %s363
        %p366 = scmp.lt.s32.totalorder %s364, 1
        %s367 = scalar_select %p366, %s364, 1
        %p368 = scmp.lt.s32.totalorder %s365, 1
        %s369 = scalar_select %p368, %s365, 1
        %s370 = smul.addr %s367, 2
        %s371 = sadd.s32 %s369, %s370
        %s372 = smul.addr %s371, 4
        %s373 = scalar_lea.vmem %s1, %s372
        %s374 = ssub.s32 1, %s25
        %s375 = smul.u32 %s26, %s374
        %s376 = smul.u32 %s27, %s374
        %s377 = smul.u32 2, %s375
        %s378 = smul.u32 2, %s376
        %s379 = smul.u32 %s26, %s25
        %s380 = smul.u32 %s27, %s25
        %s381 = smul.u32 2, %s379
        %s382 = smul.u32 2, %s380
        %p383 = scmp.eq.s32.totalorder %s26, 0
        %p384 = scmp.eq.s32.totalorder %s27, 0
        %p385 = pnand %p383, %p384
        %p386 = pneg %p385
        %s387 = sadd.s32 %s26, %s27
        %s388 = smul.u32 %s387, 2
        %p389 = scmp.eq.s32.totalorder %s25, 0
        %p390 = pnand %p389, %p386
        %p391 = pneg %p390
        // Predicated region
        $region45: #{tpu_custom_call.1} parent=43 // pred_check
          _
        $region46: #{tpu_custom_call.1} parent=43 // pred_check_branch
          %393 = sbr.rel (%p390) target = $region48
        $region47: #{tpu_custom_call.1} parent=43 // pred_region
          %vm394 = vcmask 7168
          %395 = vst.msk [vmem:[#allocation2] sm:$0xff] %vm394, 0.0
          %396 = vst.msk [vmem:[#allocation2 + $0x8] sm:$0xff] %vm394, 0.0
          %397 = vst.msk [vmem:[#allocation3] sm:$0xff] %vm394, 0.0
          %398 = vst.msk [vmem:[#allocation3 + $0x8] sm:$0xff] %vm394, 0.0
        $region48: #{tpu_custom_call.1} parent=43 // pred_fallthru
          _
        // Predicated region
        $region49: #{tpu_custom_call.1} parent=43 // pred_check
          %p399 = pneg %p389
        $region50: #{tpu_custom_call.1} parent=43 // pred_check_branch
          %401 = sbr.rel (%p399) target = $region52
        $region51: #{tpu_custom_call.1} parent=43 // pred_region
          %v402 = vld [vmem:[%s2] sm:$0xff]
          %v403 = vld [vmem:[%s2 + $0x8] sm:$0xff]
          %v404 = vld [vmem:[%s355] sm:$0xff]
          %v405 = vld [vmem:[%s3] sm:$0xff]
          %v406 = vld [vmem:[%s3 + $0x8] sm:$0xff]
          %v407 = vld [vmem:[%s373] sm:$0xff]
          %409 = vst [vmem:[#allocation1] ss:$2 sm:$0xff] %v407
          %v410 = vld.sshfl [vmem:[#allocation1] sm:$0xff pattern:$0x75316420]
          %v411 = vld.sshfl [vmem:[#allocation1 + $0x8] sm:$0xff pattern:$0x75316420]
          %vm412 = vcmask 31744
          %v414 = vsel %vm412, %v405, 0
          %v417 = vsel %vm412, %v406, 0
          %vm419 = vcmask 1043456
          %v420 = vsel %vm419, %v410, 0
          %v422 = vsel %vm419, %v411, 0
          %424 = vmatpush.msra.mxu0 0.0
          %425 = vmatpush.msra.mxu0 0.0
          %426 = vmatpush.msra.mxu0 0.0
          %427 = vmatpush.msra.mxu0 0.0
          %428 = vmatpush.msra.mxu0 0.0
          %429 = vmatpush.msra.mxu0 0.0
          %430 = vmatpush.msra.mxu0 0.0
          %431 = vmatpush.msra.mxu0 0.0
          %432 = vmatpush.msra.mxu0 0.0
          %433 = vmatpush.msra.mxu0 0.0
          %434 = vmatpush.msra.mxu0 0.0
          %435 = vmatpush.msra.mxu0 0.0
          %436 = vmatpush.msra.mxu0 0.0
          %437 = vmatpush.msra.mxu0 0.0
          %438 = vmatpush.msra.mxu0 0.0
          %439 = vmatpush.msra.mxu0 %v420
          %440 = vmatmul.f32.gmra.mxu0 %v414
          %v441 = vpop.f32.mrf.mxu0
          %v442 = vadd.f32 0.0, %v441
          %443 = vmatmul.f32.gmra.mxu0 %v417
          %v444 = vpop.f32.mrf.mxu0
          %v445 = vadd.f32 0.0, %v444
          %446 = vdwg.mxu0
          %447 = vmatpush.msra.mxu0 0.0
          %448 = vmatpush.msra.mxu0 0.0
          %449 = vmatpush.msra.mxu0 0.0
          %450 = vmatpush.msra.mxu0 0.0
          %451 = vmatpush.msra.mxu0 0.0
          %452 = vmatpush.msra.mxu0 0.0
          %453 = vmatpush.msra.mxu0 0.0
          %454 = vmatpush.msra.mxu0 0.0
          %455 = vmatpush.msra.mxu0 0.0
          %456 = vmatpush.msra.mxu0 0.0
          %457 = vmatpush.msra.mxu0 0.0
          %458 = vmatpush.msra.mxu0 0.0
          %459 = vmatpush.msra.mxu0 0.0
          %460 = vmatpush.msra.mxu0 0.0
          %461 = vmatpush.msra.mxu0 0.0
          %462 = vmatpush.msra.mxu0 %v422
          %463 = vmatmul.f32.gmra.mxu0 %v414
          %v464 = vpop.f32.mrf.mxu0
          %v465 = vadd.f32 0.0, %v464
          %466 = vmatmul.f32.gmra.mxu0 %v417
          %v467 = vpop.f32.mrf.mxu0
          %v468 = vadd.f32 0.0, %v467
          %469 = vdwg.mxu0
          %471 = vst [vmem:[#allocation1] ss:$2 sm:$0xff] %v404
          %v472 = vld.sshfl [vmem:[#allocation1] sm:$0xff pattern:$0x75316420]
          %v473 = vld.sshfl [vmem:[#allocation1 + $0x8] sm:$0xff pattern:$0x75316420]
          %v475 = vsel %vm412, %v402, 0
          %v478 = vsel %vm412, %v403, 0
          %v480 = vsel %vm419, %v472, 0
          %v482 = vsel %vm419, %v473, 0
          %484 = vmatpush.msra.mxu0 0.0
          %485 = vmatpush.msra.mxu0 0.0
          %486 = vmatpush.msra.mxu0 0.0
          %487 = vmatpush.msra.mxu0 0.0
          %488 = vmatpush.msra.mxu0 0.0
          %489 = vmatpush.msra.mxu0 0.0
          %490 = vmatpush.msra.mxu0 0.0
          %491 = vmatpush.msra.mxu0 0.0
          %492 = vmatpush.msra.mxu0 0.0
          %493 = vmatpush.msra.mxu0 0.0
          %494 = vmatpush.msra.mxu0 0.0
          %495 = vmatpush.msra.mxu0 0.0
          %496 = vmatpush.msra.mxu0 0.0
          %497 = vmatpush.msra.mxu0 0.0
          %498 = vmatpush.msra.mxu0 0.0
          %499 = vmatpush.msra.mxu0 %v480
          %500 = vmatmul.f32.gmra.mxu0 %v475
          %v501 = vpop.f32.mrf.mxu0
          %v502 = vadd.f32 %v442, %v501
          %503 = vmatmul.f32.gmra.mxu0 %v478
          %v504 = vpop.f32.mrf.mxu0
          %v505 = vadd.f32 %v445, %v504
          %506 = vdwg.mxu0
          %507 = vmatpush.msra.mxu0 0.0
          %508 = vmatpush.msra.mxu0 0.0
          %509 = vmatpush.msra.mxu0 0.0
          %510 = vmatpush.msra.mxu0 0.0
          %511 = vmatpush.msra.mxu0 0.0
          %512 = vmatpush.msra.mxu0 0.0
          %513 = vmatpush.msra.mxu0 0.0
          %514 = vmatpush.msra.mxu0 0.0
          %515 = vmatpush.msra.mxu0 0.0
          %516 = vmatpush.msra.mxu0 0.0
          %517 = vmatpush.msra.mxu0 0.0
          %518 = vmatpush.msra.mxu0 0.0
          %519 = vmatpush.msra.mxu0 0.0
          %520 = vmatpush.msra.mxu0 0.0
          %521 = vmatpush.msra.mxu0 0.0
          %522 = vmatpush.msra.mxu0 %v482
          %523 = vmatmul.f32.gmra.mxu0 %v475
          %v524 = vpop.f32.mrf.mxu0
          %v525 = vadd.f32 %v465, %v524
          %526 = vmatmul.f32.gmra.mxu0 %v478
          %v527 = vpop.f32.mrf.mxu0
          %v528 = vadd.f32 %v468, %v527
          %529 = vdwg.mxu0
          %s530 = smul.u32 %s388, 4
          %s531 = smul.addr %s530, 8
          %s532 = scalar_lea.vmem [#allocation6], %s531
          %533 = vst [vmem:[%s532] sm:$0xff] %v502
          %534 = vst [vmem:[%s532 + $0x8] sm:$0xff] %v525
          %535 = vst [vmem:[%s532 + $0x10] sm:$0xff] %v505
          %536 = vst [vmem:[%s532 + $0x18] sm:$0xff] %v528
          %v537 = vadd.f32 %v502, %v525
          %538 = vadd.xlane.f32.xlu0 %v537
          %v539 = vpop.xlane.xlu0 %538
          %v540 = vadd.f32 %v505, %v528
          %541 = vadd.xlane.f32.xlu0 %v540
          %v542 = vpop.xlane.xlu0 %541
          %v543 = vadd.f32 %v539, 0.0
          %v544 = vadd.f32 %v542, 0.0
          %v545 = vmul.f32 %v502, %v502
          %v546 = vmul.f32 %v525, %v525
          %v547 = vmul.f32 %v505, %v505
          %v548 = vmul.f32 %v528, %v528
          %v549 = vadd.f32 %v545, %v546
          %550 = vadd.xlane.f32.xlu0 %v549
          %v551 = vpop.xlane.xlu0 %550
          %v552 = vadd.f32 %v547, %v548
          %553 = vadd.xlane.f32.xlu0 %v552
          %v554 = vpop.xlane.xlu0 %553
          %v555 = vadd.f32 %v551, 0.0
          %v556 = vadd.f32 %v554, 0.0
          %v557 = vld [vmem:[%s2] sm:$0xff]
          %v558 = vld [vmem:[%s2 + $0x8] sm:$0xff]
          %s559 = scalar_lea.vmem %s355, 8
          %v560 = vld [vmem:[%s559] sm:$0xff]
          %v561 = vld [vmem:[%s3] sm:$0xff]
          %v562 = vld [vmem:[%s3 + $0x8] sm:$0xff]
          %s563 = scalar_lea.vmem %s373, 8
          %v564 = vld [vmem:[%s563] sm:$0xff]
          %566 = vst [vmem:[#allocation1] ss:$2 sm:$0xff] %v564
          %v567 = vld.sshfl [vmem:[#allocation1] sm:$0xff pattern:$0x75316420]
          %v568 = vld.sshfl [vmem:[#allocation1 + $0x8] sm:$0xff pattern:$0x75316420]
          %v570 = vsel %vm412, %v561, 0
          %v573 = vsel %vm412, %v562, 0
          %v575 = vsel %vm419, %v567, 0
          %v577 = vsel %vm419, %v568, 0
          %579 = vmatpush.msra.mxu0 0.0
          %580 = vmatpush.msra.mxu0 0.0
          %581 = vmatpush.msra.mxu0 0.0
          %582 = vmatpush.msra.mxu0 0.0
          %583 = vmatpush.msra.mxu0 0.0
          %584 = vmatpush.msra.mxu0 0.0
          %585 = vmatpush.msra.mxu0 0.0
          %586 = vmatpush.msra.mxu0 0.0
          %587 = vmatpush.msra.mxu0 0.0
          %588 = vmatpush.msra.mxu0 0.0
          %589 = vmatpush.msra.mxu0 0.0
          %590 = vmatpush.msra.mxu0 0.0
          %591 = vmatpush.msra.mxu0 0.0
          %592 = vmatpush.msra.mxu0 0.0
          %593 = vmatpush.msra.mxu0 0.0
          %594 = vmatpush.msra.mxu0 %v575
          %595 = vmatmul.f32.gmra.mxu0 %v570
          %v596 = vpop.f32.mrf.mxu0
          %v597 = vadd.f32 0.0, %v596
          %598 = vmatmul.f32.gmra.mxu0 %v573
          %v599 = vpop.f32.mrf.mxu0
          %v600 = vadd.f32 0.0, %v599
          %601 = vdwg.mxu0
          %602 = vmatpush.msra.mxu0 0.0
          %603 = vmatpush.msra.mxu0 0.0
          %604 = vmatpush.msra.mxu0 0.0
          %605 = vmatpush.msra.mxu0 0.0
          %606 = vmatpush.msra.mxu0 0.0
          %607 = vmatpush.msra.mxu0 0.0
          %608 = vmatpush.msra.mxu0 0.0
          %609 = vmatpush.msra.mxu0 0.0
          %610 = vmatpush.msra.mxu0 0.0
          %611 = vmatpush.msra.mxu0 0.0
          %612 = vmatpush.msra.mxu0 0.0
          %613 = vmatpush.msra.mxu0 0.0
          %614 = vmatpush.msra.mxu0 0.0
          %615 = vmatpush.msra.mxu0 0.0
          %616 = vmatpush.msra.mxu0 0.0
          %617 = vmatpush.msra.mxu0 %v577
          %618 = vmatmul.f32.gmra.mxu0 %v570
          %v619 = vpop.f32.mrf.mxu0
          %v620 = vadd.f32 0.0, %v619
          %621 = vmatmul.f32.gmra.mxu0 %v573
          %v622 = vpop.f32.mrf.mxu0
          %v623 = vadd.f32 0.0, %v622
          %624 = vdwg.mxu0
          %626 = vst [vmem:[#allocation1] ss:$2 sm:$0xff] %v560
          %v627 = vld.sshfl [vmem:[#allocation1] sm:$0xff pattern:$0x75316420]
          %v628 = vld.sshfl [vmem:[#allocation1 + $0x8] sm:$0xff pattern:$0x75316420]
          %v630 = vsel %vm412, %v557, 0
          %v633 = vsel %vm412, %v558, 0
          %v635 = vsel %vm419, %v627, 0
          %v637 = vsel %vm419, %v628, 0
          %639 = vmatpush.msra.mxu0 0.0
          %640 = vmatpush.msra.mxu0 0.0
          %641 = vmatpush.msra.mxu0 0.0
          %642 = vmatpush.msra.mxu0 0.0
          %643 = vmatpush.msra.mxu0 0.0
          %644 = vmatpush.msra.mxu0 0.0
          %645 = vmatpush.msra.mxu0 0.0
          %646 = vmatpush.msra.mxu0 0.0
          %647 = vmatpush.msra.mxu0 0.0
          %648 = vmatpush.msra.mxu0 0.0
          %649 = vmatpush.msra.mxu0 0.0
          %650 = vmatpush.msra.mxu0 0.0
          %651 = vmatpush.msra.mxu0 0.0
          %652 = vmatpush.msra.mxu0 0.0
          %653 = vmatpush.msra.mxu0 0.0
          %654 = vmatpush.msra.mxu0 %v635
          %655 = vmatmul.f32.gmra.mxu0 %v630
          %v656 = vpop.f32.mrf.mxu0
          %v657 = vadd.f32 %v597, %v656
          %658 = vmatmul.f32.gmra.mxu0 %v633
          %v659 = vpop.f32.mrf.mxu0
          %v660 = vadd.f32 %v600, %v659
          %661 = vdwg.mxu0
          %662 = vmatpush.msra.mxu0 0.0
          %663 = vmatpush.msra.mxu0 0.0
          %664 = vmatpush.msra.mxu0 0.0
          %665 = vmatpush.msra.mxu0 0.0
          %666 = vmatpush.msra.mxu0 0.0
          %667 = vmatpush.msra.mxu0 0.0
          %668 = vmatpush.msra.mxu0 0.0
          %669 = vmatpush.msra.mxu0 0.0
          %670 = vmatpush.msra.mxu0 0.0
          %671 = vmatpush.msra.mxu0 0.0
          %672 = vmatpush.msra.mxu0 0.0
          %673 = vmatpush.msra.mxu0 0.0
          %674 = vmatpush.msra.mxu0 0.0
          %675 = vmatpush.msra.mxu0 0.0
          %676 = vmatpush.msra.mxu0 0.0
          %677 = vmatpush.msra.mxu0 %v637
          %678 = vmatmul.f32.gmra.mxu0 %v630
          %v679 = vpop.f32.mrf.mxu0
          %v680 = vadd.f32 %v620, %v679
          %681 = vmatmul.f32.gmra.mxu0 %v633
          %v682 = vpop.f32.mrf.mxu0
          %v683 = vadd.f32 %v623, %v682
          %684 = vdwg.mxu0
          %s685 = sadd.s32 %s388, 1
          %s686 = smul.u32 %s685, 4
          %s687 = smul.addr %s686, 8
          %s688 = scalar_lea.vmem [#allocation6], %s687
          %689 = vst [vmem:[%s688] sm:$0xff] %v657
          %690 = vst [vmem:[%s688 + $0x8] sm:$0xff] %v680
          %691 = vst [vmem:[%s688 + $0x10] sm:$0xff] %v660
          %692 = vst [vmem:[%s688 + $0x18] sm:$0xff] %v683
          %v693 = vadd.f32 %v657, %v680
          %694 = vadd.xlane.f32.xlu0 %v693
          %v695 = vpop.xlane.xlu0 %694
          %v696 = vadd.f32 %v660, %v683
          %697 = vadd.xlane.f32.xlu0 %v696
          %v698 = vpop.xlane.xlu0 %697
          %v699 = vadd.f32 %v543, %v695
          %v700 = vadd.f32 %v544, %v698
          %v701 = vmul.f32 %v657, %v657
          %v702 = vmul.f32 %v680, %v680
          %v703 = vmul.f32 %v660, %v660
          %v704 = vmul.f32 %v683, %v683
          %v705 = vadd.f32 %v701, %v702
          %706 = vadd.xlane.f32.xlu0 %v705
          %v707 = vpop.xlane.xlu0 %706
          %v708 = vadd.f32 %v703, %v704
          %709 = vadd.xlane.f32.xlu0 %v708
          %v710 = vpop.xlane.xlu0 %709
          %v711 = vadd.f32 %v555, %v707
          %v712 = vadd.f32 %v556, %v710
          %v713 = vld [vmem:[#allocation2] sm:$0xff]
          %v714 = vld [vmem:[#allocation2 + $0x8] sm:$0xff]
          %v715 = vadd.f32 %v713, %v699
          %v716 = vadd.f32 %v714, %v700
          %vm717 = vcmask 7168
          %718 = vst.msk [vmem:[#allocation2] sm:$0xff] %vm717, %v715
          %719 = vst.msk [vmem:[#allocation2 + $0x8] sm:$0xff] %vm717, %v716
          %v720 = vld [vmem:[#allocation3] sm:$0xff]
          %v721 = vld [vmem:[#allocation3 + $0x8] sm:$0xff]
          %v722 = vadd.f32 %v720, %v711
          %v723 = vadd.f32 %v721, %v712
          %724 = vst.msk [vmem:[#allocation3] sm:$0xff] %vm717, %v722
          %725 = vst.msk [vmem:[#allocation3 + $0x8] sm:$0xff] %vm717, %v723
        $region52: #{tpu_custom_call.1} parent=43 // pred_fallthru
          _
        %p726 = scmp.eq.s32.totalorder %s25, 1
        %p727 = pnand %p726, %p386
        %p728 = pneg %p727
        // Predicated region
        $region53: #{tpu_custom_call.1} parent=43 // pred_check
          _
        $region54: #{tpu_custom_call.1} parent=43 // pred_check_branch
          %730 = sbr.rel (%p727) target = $region56
        $region55: #{tpu_custom_call.1} parent=43 // pred_region
          %v731 = vld [vmem:[#allocation2] sm:$0xff]
          %v732 = vld [vmem:[#allocation2 + $0x8] sm:$0xff]
          %v733 = vmul.f32 %v731, 0.001953125
          %v734 = vmul.f32 %v732, 0.001953125
          %v735 = vld [vmem:[#allocation3] sm:$0xff]
          %v736 = vld [vmem:[#allocation3 + $0x8] sm:$0xff]
          %v737 = vmul.f32 %v735, 0.001953125
          %v738 = vmul.f32 %v736, 0.001953125
          %v739 = vmul.f32 %v733, %v733
          %v740 = vmul.f32 %v734, %v734
          %v741 = vsub.f32 %v737, %v739
          %v742 = vsub.f32 %v738, %v740
          %v743 = vld [vmem:[%s4] sm:$0xff]
          %v744 = vld [vmem:[%s4 + $0x8] sm:$0xff]
          %v745 = vadd.f32 %v741, 1e-05
          %v746 = vadd.f32 %v742, 1e-05
          %v747 = vrsqrt.pop %v745
          %v748 = vmul.f32 %v747, %v745
          %v749 = vmul.f32 %v748, %v747
          %v750 = vmul.f32 0.5, %v749
          %v751 = vsub.f32 1.5, %v750
          %v752 = vmul.f32 %v747, %v751
          %vm753 = vweird.f32 %v745
          %vm754 = vweird.f32 %v747
          %vm755 = vmor %vm753, %vm754
          %v756 = vsel %vm755, %v747, %v752
          %v757 = vrsqrt.pop %v746
          %v758 = vmul.f32 %v757, %v746
          %v759 = vmul.f32 %v758, %v757
          %v760 = vmul.f32 0.5, %v759
          %v761 = vsub.f32 1.5, %v760
          %v762 = vmul.f32 %v757, %v761
          %vm763 = vweird.f32 %v746
          %vm764 = vweird.f32 %v757
          %vm765 = vmor %vm763, %vm764
          %v766 = vsel %vm765, %v757, %v762
          %v767 = vmul.f32 %v743, %v756
          %v768 = vmul.f32 %v744, %v766
          %v769 = vld [vmem:[%s5] sm:$0xff]
          %v770 = vld [vmem:[%s5 + $0x8] sm:$0xff]
          %v771 = vmul.f32 %v733, %v767
          %v772 = vmul.f32 %v734, %v768
          %v773 = vsub.f32 %v769, %v771
          %v774 = vsub.f32 %v770, %v772
          %vm775 = vcmask 7168
          %776 = vst.msk [vmem:[#allocation4] sm:$0xff] %vm775, %v767
          %777 = vst.msk [vmem:[#allocation4 + $0x8] sm:$0xff] %vm775, %v768
          %778 = vst.msk [vmem:[#allocation5] sm:$0xff] %vm775, %v773
          %779 = vst.msk [vmem:[#allocation5 + $0x8] sm:$0xff] %vm775, %v774
        $region56: #{tpu_custom_call.1} parent=43 // pred_fallthru
          _
        // Predicated region
        $region57: #{tpu_custom_call.1} parent=43 // pred_check
          %p780 = pneg %p726
        $region58: #{tpu_custom_call.1} parent=43 // pred_check_branch
          %782 = sbr.rel (%p780) target = $region60
        $region59: #{tpu_custom_call.1} parent=43 // pred_region
          %v783 = vld [vmem:[#allocation4] sm:$0xff]
          %v784 = vld [vmem:[#allocation4 + $0x8] sm:$0xff]
          %v785 = vld [vmem:[#allocation5] sm:$0xff]
          %v786 = vld [vmem:[#allocation5 + $0x8] sm:$0xff]
          %s787 = smul.u32 %s388, 4
          %s788 = smul.addr %s787, 8
          %s789 = scalar_lea.vmem [#allocation6], %s788
          %v790 = vld [vmem:[%s789] sm:$0xff]
          %v791 = vld [vmem:[%s789 + $0x8] sm:$0xff]
          %v792 = vld [vmem:[%s789 + $0x10] sm:$0xff]
          %v793 = vld [vmem:[%s789 + $0x18] sm:$0xff]
          %795 = vset.pattern.permute.xlu0 0
          %796 = vperm.xlu0 %795, %v783
          %v797 = vpop.permute.xlu0 %796
          %800 = vset.pattern.permute.xlu0 0
          %801 = vperm.xlu0 %800, %v784
          %v802 = vpop.permute.xlu0 %801
          %v804 = vmul.f32 %v790, %v797
          %v805 = vmul.f32 %v791, %v797
          %v806 = vmul.f32 %v792, %v802
          %v807 = vmul.f32 %v793, %v802
          %809 = vset.pattern.permute.xlu0 0
          %810 = vperm.xlu0 %809, %v785
          %v811 = vpop.permute.xlu0 %810
          %814 = vset.pattern.permute.xlu0 0
          %815 = vperm.xlu0 %814, %v786
          %v816 = vpop.permute.xlu0 %815
          %v818 = vadd.f32 %v804, %v811
          %v819 = vadd.f32 %v805, %v811
          %v820 = vadd.f32 %v806, %v816
          %v821 = vadd.f32 %v807, %v816
          %v822 = vmax.f32 %v818, 0.0
          %v823 = vmax.f32 %v819, 0.0
          %v824 = vmax.f32 %v820, 0.0
          %v825 = vmax.f32 %v821, 0.0
          %826 = vst [vmem:[%s342] sm:$0xff] %v822
          %827 = vst [vmem:[%s342 + $0x8] sm:$0xff] %v823
          %828 = vst [vmem:[%s342 + $0x10] sm:$0xff] %v824
          %829 = vst [vmem:[%s342 + $0x18] sm:$0xff] %v825
          %s830 = sadd.s32 %s388, 1
          %s831 = smul.u32 %s830, 4
          %s832 = smul.addr %s831, 8
          %s833 = scalar_lea.vmem [#allocation6], %s832
          %v834 = vld [vmem:[%s833] sm:$0xff]
          %v835 = vld [vmem:[%s833 + $0x8] sm:$0xff]
          %v836 = vld [vmem:[%s833 + $0x10] sm:$0xff]
          %v837 = vld [vmem:[%s833 + $0x18] sm:$0xff]
          %v838 = vmul.f32 %v834, %v797
          %v839 = vmul.f32 %v835, %v797
          %v840 = vmul.f32 %v836, %v802
          %v841 = vmul.f32 %v837, %v802
          %v842 = vadd.f32 %v838, %v811
          %v843 = vadd.f32 %v839, %v811
          %v844 = vadd.f32 %v840, %v816
          %v845 = vadd.f32 %v841, %v816
          %v846 = vmax.f32 %v842, 0.0
          %v847 = vmax.f32 %v843, 0.0
          %v848 = vmax.f32 %v844, 0.0
          %v849 = vmax.f32 %v845, 0.0
          %s850 = scalar_lea.vmem %s342, 32 [#allocation7]
          %851 = vst [vmem:[%s850] sm:$0xff] %v846
          %852 = vst [vmem:[%s850 + $0x8] sm:$0xff] %v847
          %853 = vst [vmem:[%s850 + $0x10] sm:$0xff] %v848
          %854 = vst [vmem:[%s850 + $0x18] sm:$0xff] %v849
        $region60: #{tpu_custom_call.1} parent=43 // pred_fallthru
          _
        %s855 = sand.u32 %s205, 1
        %s856 = scalar_lea.sflag [#allocation8], %s855
        %s857 = sand.u32 %s205, 1
        %s858 = smul.addr %s857, 64
        %s859 = scalar_lea.vmem [#allocation7], %s858
        // Predicated region
        $region61: #{tpu_custom_call.1} parent=43 // pred_check
          %p860 = pneg %p215
        $region62: #{tpu_custom_call.1} parent=43 // pred_check_branch
          %862 = sbr.rel (%p860) target = $region64
        $region63: #{tpu_custom_call.1} parent=43 // pred_region
          %s863 = smul.u32 %s26, %s25
          %s864 = smul.u32 %s27, %s25
          %s865 = smul.u32 2, %s863
          %s866 = smul.u32 2, %s864
          %868 = vsyncadd %s856, 0
          %s869 = smul.addr %s865, 4
          %s870 = sadd.s32 %s866, %s869
          %s871 = smul.addr %s870, 8
          %s872 = scalar_lea.hbm %s6, %s871
          %s873 = sshll.u32 %s859, 4
          %s874 = int_to_ptr.vmem [resolvable:$true] %s873
          %s875 = sshll.u32 %s872, 4
          %s876 = int_to_ptr.hbm [resolvable:$true] %s875
          %881 = dma.vmem_to_hbm [thread:$0]  %s874, 1024, %s876, %s856, 256, 256, 16
        $region64: #{tpu_custom_call.1} parent=43 // pred_fallthru
          _
      $region44: #{tpu_custom_call.1} parent=5 // pred_fallthru
        _
      %p882 = scmp.le.s32.totalorder 2, %s15
      // Predicated region
      $region65: #{tpu_custom_call.1} parent=5 // pred_check
        %p883 = pneg %p882
      $region66: #{tpu_custom_call.1} parent=5 // pred_check_branch
        %885 = sbr.rel (%p883) target = $region68
      $region67: #{tpu_custom_call.1} parent=5 // pred_region
        %s886 = ssub.s32 %s15, 2
        // Predicated region
        $region69: #{tpu_custom_call.1} parent=67 // pred_check
          %p887 = pneg %p221
        $region70: #{tpu_custom_call.1} parent=67 // pred_check_branch
          %889 = sbr.rel (%p887) target = $region72
        $region71: #{tpu_custom_call.1} parent=67 // pred_region
          %s890 = sand.u32 %s206, 1
          %s891 = scalar_lea.sflag [#allocation8], %s890
          %s892 = sand.u32 %s206, 1
          %s893 = smul.addr %s892, 64
          %s894 = scalar_lea.vmem [#allocation7], %s893
          %896 = dma.done %s891, 1024
        $region72: #{tpu_custom_call.1} parent=67 // pred_fallthru
          _
      $region68: #{tpu_custom_call.1} parent=5 // pred_fallthru
        _
    $region6: #{tpu_custom_call.1} parent=1 // loop_footer
      %s19 = sadd.s32 1, %s15
    $region7: #{tpu_custom_call.1} parent=1 // loop_footer_branch
      %14 = sbr.rel target = $region3
    $region8: #{tpu_custom_call.1} parent=1 // loop_exit
      _
    %897 = vsyncpa [#allocation8], 1
    %s898 = scalar_lea.sflag [#allocation8], 1
    %899 = vsyncpa %s898, 1

</llo_original>
